<compile_context>
chip_gen: v6e
topology: v6e:2x2x1
jax: 0.10.0
libtpu: 0.0.40
codegen_flags: <defaults>
</compile_context>

<pallas_src>
import jax
import jax.numpy as jnp
from jax.experimental import pallas as pl
from jax.experimental.pallas import tpu as pltpu


# Total bytes per block across (branch, residual, out).  Double-buffered this
# is ~24 MiB resident -- fits all generations once vmem_limit_bytes is raised.
_TARGET_BLOCK_BYTES = 12 * 1024 * 1024
# Above this total size, force grid >= 2 so both v7x TensorCores get work.
_MIN_SPLIT_BYTES = 2 * 1024 * 1024
_VMEM_LIMIT_BYTES = 48 * 1024 * 1024


def _cdiv(a: int, b: int) -> int:
    return -(-a // b)


def _residual_add_kernel(branch_ref, res_ref, out_ref):
    # depth_connection with identity residual_transform: elementwise VPU add.
    # dtype promotion / final cast happen on the VPU (free slot vs. vst).
    out_ref[...] = (branch_ref[...] + res_ref[...]).astype(out_ref.dtype)


def _sublane_multiple(itemsize: int) -> int:
    # Sub-32-bit dtypes pack along sublanes: keep row tiles aligned to the
    # packed sublane count to avoid masked/packed partial-tile handling.
    if itemsize >= 4:
        return 8
    if itemsize == 2:
        return 16
    return 32


def _choose_block(rows: int, cols: int, itemsizes) -> tuple[int, int]:
    """Pick (tile_rows, tile_cols) for a (rows, cols) array; cols % 128 == 0."""
    sub = max(_sublane_multiple(i) for i in itemsizes)
    total_item = sum(itemsizes)           # bytes per element across all 3 arrays
    row_bytes = cols * total_item

    # Extremely wide rows: tile the lane dim as well (kept a multiple of 128).
    if row_bytes * sub > _TARGET_BLOCK_BYTES:
        tile_cols = max(128, (_TARGET_BLOCK_BYTES // (sub * total_item)) // 128 * 128)
        tile_rows = sub if rows >= sub else rows
        return tile_rows, tile_cols

    tile_cols = cols
    tile_rows = max(sub, (_TARGET_BLOCK_BYTES // row_bytes) // sub * sub)
    if tile_rows >= rows:
        tile_rows = rows  # single block == full extent (always legal)
        # v7x megacore: make sure there are >= 2 grid steps for non-tiny tensors.
        if rows > 2 * sub and rows * row_bytes > _MIN_SPLIT_BYTES:
            tile_rows = _cdiv(_cdiv(rows, 2), sub) * sub
    return tile_rows, tile_cols


def _pallas_add_2d(b2: jax.Array, r2: jax.Array, out_dtype, alias_ok: bool) -> jax.Array:
    """Tiled, lane-dense elementwise add of two (rows, cols) arrays."""
    rows, cols = b2.shape
    itemsizes = (
        b2.dtype.itemsize,
        r2.dtype.itemsize,
        jnp.dtype(out_dtype).itemsize,
    )
    tile_rows, tile_cols = _choose_block(rows, cols, itemsizes)
    grid = (_cdiv(rows, tile_rows), _cdiv(cols, tile_cols))
    spec = pl.BlockSpec((tile_rows, tile_cols), lambda i, j: (i, j))

    bytes_accessed = rows * cols * sum(itemsizes)
    return pl.pallas_call(
        _residual_add_kernel,
        out_shape=jax.ShapeDtypeStruct((rows, cols), out_dtype),
        grid=grid,
        in_specs=[spec, spec],
        out_specs=spec,
        compiler_params=pltpu.CompilerParams(
            dimension_semantics=("parallel", "parallel"),
            vmem_limit_bytes=_VMEM_LIMIT_BYTES,
        ),
        cost_estimate=pl.CostEstimate(
            flops=rows * cols,
            transcendentals=0,
            bytes_accessed=bytes_accessed,
        ),
        # In-place add when the output buffer matches branch_out exactly.
        input_output_aliases=({0: 0} if alias_ok else {}),
    )(b2, r2)


@jax.jit
def residual_add(branch_out: jax.Array, residuals: jax.Array) -> jax.Array:
    """branch_out + residuals, as a tiled, lane-dense Pallas TPU kernel."""
    if branch_out.shape != residuals.shape:
        raise ValueError(
            f"shape mismatch: {branch_out.shape} vs {residuals.shape}"
        )
    out_dtype = jnp.result_type(branch_out.dtype, residuals.dtype)
    orig_shape = branch_out.shape
    n = branch_out.size
    if n == 0:
        return jnp.zeros(orig_shape, out_dtype)

    alias_ok = branch_out.dtype == out_dtype
    last = orig_shape[-1] if branch_out.ndim else 1

    # --- fast path: last dim already lane-dense (multiple of 128) ------------
    if branch_out.ndim >= 2 and last % 128 == 0:
        rows = n // last
        out2 = _pallas_add_2d(
            branch_out.reshape(rows, last),
            residuals.reshape(rows, last),
            out_dtype,
            alias_ok,
        )
        return out2.reshape(orig_shape)

    # --- awkward shapes: flatten to a lane-dense (rows, lane) view -----------
    b = branch_out.reshape(-1)
    r = residuals.reshape(-1)
    if n % 128 == 0:
        lane = 512 if n % 512 == 0 else (256 if n % 256 == 0 else 128)
        padded_n = n
    else:
        # Only here do we pay a pad pass, and the pad itself is < 128 elements.
        lane = 128
        padded_n = _cdiv(n, 128) * 128
        b = jnp.pad(b, (0, padded_n - n))
        r = jnp.pad(r, (0, padded_n - n))
    rows = padded_n // lane

    out2 = _pallas_add_2d(
        b.reshape(rows, lane), r.reshape(rows, lane), out_dtype, alias_ok
    )
    out = out2.reshape(-1)
    if padded_n != n:
        out = out[:n]
    return out.reshape(orig_shape)


class Residual:
    """JAX port of hyper_connections.Residual (residual_transform defaults to identity)."""

    def __init__(self, branch=None, residual_transform=None):
        self.branch = branch
        self.residual_transform = residual_transform  # None -> identity

    def width_connection(self, residuals):
        return residuals, residuals, dict()

    def depth_connection(self, branch_output, residuals):
        if self.residual_transform is not None:
            residuals = self.residual_transform(residuals)
        return residual_add(branch_output, residuals)

    def decorate_branch(self, branch):
        assert self.branch is None, "branch was already wrapped on init"

        def forward_and_add_residual(residual, *args, **kwargs):
            branch_input, add_residual = self(residual)
            return add_residual(branch(branch_input, *args, **kwargs))

        return forward_and_add_residual

    def __call__(self, residuals, *branch_args, **branch_kwargs):
        branch_input, residuals, residual_kwargs = self.width_connection(residuals)

        def add_residual_fn(branch_out):
            leaves, treedef = jax.tree_util.tree_flatten(branch_out)
            first, *rest = leaves
            first = self.depth_connection(first, residuals, **residual_kwargs)
            return jax.tree_util.tree_unflatten(treedef, [first, *rest])

        if self.branch is None:
            return branch_input, add_residual_fn

        branch_output = self.branch(branch_input, *branch_args, **branch_kwargs)
        return add_residual_fn(branch_output)


if __name__ == "__main__":
    key = jax.random.PRNGKey(0)
    k_res, k_w = jax.random.split(key)

    # --- primary small test matching the module's typical (B, S, H) layout ---
    B, S, H = 2, 8, 32
    residuals = jax.random.normal(k_res, (B, S, H), dtype=jnp.float32)
    w = jax.random.normal(k_w, (H, H), dtype=jnp.float32) * 0.02

    def branch(x):
        return jnp.tanh(x @ w)

    residual_mod = Residual()
    branch_input, add_residual = residual_mod(residuals)
    branch_out = branch(branch_input)
    ref = branch_out + residuals  # computed before the kernel call
    out = jax.block_until_ready(add_residual(branch_out))
    assert out.shape == (B, S, H)
    assert out.dtype == residuals.dtype
    assert jnp.allclose(out, ref, atol=1e-6, rtol=1e-6)

    # --- fast path, 128-multiple last dim, grid split for megacore -----------
    k1, k2 = jax.random.split(jax.random.PRNGKey(1))
    x1 = jax.random.normal(k1, (8, 256, 512), dtype=jnp.float32)
    y1 = jax.random.normal(k2, (8, 256, 512), dtype=jnp.float32)
    o1 = jax.block_until_ready(residual_add(x1, y1))
    assert jnp.allclose(o1, x1 + y1, atol=1e-6, rtol=1e-6)

    # --- fast path with a ragged last row-block (rows % tile_rows != 0) ------
    k3, k4 = jax.random.split(jax.random.PRNGKey(2))
    x2 = jax.random.normal(k3, (8, 257, 512), dtype=jnp.float32)
    y2 = jax.random.normal(k4, (8, 257, 512), dtype=jnp.float32)
    o2 = jax.block_until_ready(residual_add(x2, y2))
    assert jnp.allclose(o2, x2 + y2, atol=1e-6, rtol=1e-6)

    # --- awkward (non-divisible) shape exercising the flatten/pad path -------
    k5, k6 = jax.random.split(jax.random.PRNGKey(3))
    x3 = jax.random.normal(k5, (3, 7, 33), dtype=jnp.float32)
    y3 = jax.random.normal(k6, (3, 7, 33), dtype=jnp.float32)
    o3 = jax.block_until_ready(residual_add(x3, y3))
    assert jnp.allclose(o3, x3 + y3, atol=1e-6, rtol=1e-6)

    # --- mixed dtype: bf16 branch + f32 residual, in-kernel promotion --------
    k7, k8 = jax.random.split(jax.random.PRNGKey(4))
    x4 = jax.random.normal(k7, (4, 128, 256), dtype=jnp.bfloat16)
    y4 = jax.random.normal(k8, (4, 128, 256), dtype=jnp.float32)
    o4 = jax.block_until_ready(residual_add(x4, y4))
    assert o4.dtype == jnp.float32
    assert jnp.allclose(o4, x4.astype(jnp.float32) + y4, atol=1e-6, rtol=1e-6)

    print("KERNEL_OK")
</pallas_src>

<mosaic_0001>
module attributes {stable_mosaic.version = 11 : i64} {
  func.func @_residual_add_kernel(%arg0: i32, %arg1: i32, %arg2: memref<1x512xf32, #tpu.memory_space<vmem>>, %arg3: memref<1x512xf32, #tpu.memory_space<vmem>>, %arg4: memref<1x512xf32, #tpu.memory_space<vmem>>) attributes {dimension_semantics = [#tpu.dimension_semantics<parallel>, #tpu.dimension_semantics<parallel>], iteration_bounds = array<i64: 1, 1>, scalar_prefetch = 0 : i64, scratch_operands = 0 : i64, tpu.core_type = #tpu.core_type<tc>, window_params = [{transform_indices = @transform_0, window_bounds = array<i64: 1, 512>}, {transform_indices = @transform_1, window_bounds = array<i64: 1, 512>}, {transform_indices = @transform_2, window_bounds = array<i64: 1, 512>}]} {
    %c0 = arith.constant 0 : index
    %c0_0 = arith.constant 0 : index
    %0 = vector.load %arg2[%c0, %c0_0] : memref<1x512xf32, #tpu.memory_space<vmem>>, vector<1x512xf32>
    %c0_1 = arith.constant 0 : index
    %c0_2 = arith.constant 0 : index
    %1 = vector.load %arg3[%c0_1, %c0_2] : memref<1x512xf32, #tpu.memory_space<vmem>>, vector<1x512xf32>
    %2 = arith.addf %0, %1 : vector<1x512xf32>
    %c0_3 = arith.constant 0 : index
    %c0_4 = arith.constant 0 : index
    %3 = vector.load %arg4[%c0_3, %c0_4] : memref<1x512xf32, #tpu.memory_space<vmem>>, vector<1x512xf32>
    tpu.vector_store %arg4[%c0_3, %c0_4], %2 {strides = array<i32>} : memref<1x512xf32, #tpu.memory_space<vmem>>, vector<1x512xf32>,
    return
  }
  func.func @transform_0(%arg0: i32, %arg1: i32) -> (i32, i32) {
    %c0_i32 = arith.constant 0 : i32
    return %arg0, %arg1 : i32, i32
  }
  func.func @transform_1(%arg0: i32, %arg1: i32) -> (i32, i32) {
    %c0_i32 = arith.constant 0 : i32
    return %arg0, %arg1 : i32, i32
  }
  func.func @transform_2(%arg0: i32, %arg1: i32) -> (i32, i32) {
    %c0_i32 = arith.constant 0 : i32
    return %arg0, %arg1 : i32, i32
  }
}

</mosaic_0001>

<llo_original>
// kernel: residual_add.1
$region0: #{residual_add.1}
  #allocation0 [shape = 'u32[]', space=smem, size = 0x4, offset = 0x4, fixed_abs, tag = 'smem constant byte address 0x4 - core index']
  #allocation1 [shape = 'u32[144,128]{1,0:T(1,128)}', space=vmem, size = 0x12000, scoped, tag = 'internal scratch']
  %s0 = inlined_call_operand.vmem [shape: f32[1,512], index: 0, kind: input, shape index: {}, may-alias: {0,2}]
  %s1 = inlined_call_operand.vmem [shape: f32[1,512], index: 1, kind: input, shape index: {}]
  %s2 = inlined_call_operand.vmem [shape: f32[1,512], index: 2, kind: output, shape index: {}, may-alias: {0,2}]
  %s3 = sld [smem:[#allocation0]]
  $region18: #{residual_add.1} parent=0
    _
  %s5 = ssub.s32 1, %s3
  %s6 = scalar_select 0, %s5, %s3
  // Predicated region
  $region2: #{residual_add.1} parent=0 // pred_check
    _
  $region3: #{residual_add.1} parent=0 // pred_check_branch
    %8 = sbr.rel (0) target = $region5
  $region4: #{residual_add.1} parent=0 // pred_region
    _
  $region5: #{residual_add.1} parent=0 // pred_fallthru
    _
  // Predicated region
  $region6: #{residual_add.1} parent=0 // pred_check
    _
  $region7: #{residual_add.1} parent=0 // pred_check_branch
    %10 = sbr.rel (0) target = $region9
  $region8: #{residual_add.1} parent=0 // pred_region
    _
  $region9: #{residual_add.1} parent=0 // pred_fallthru
    _
  %v11 = vld [vmem:[%s0] sm:$0xf]
  %v12 = vld [vmem:[%s1] sm:$0xf]
  %v13 = vadd.f32 %v11, %v12
  %v14 = vlaneseq
  %vm15 = vcmp.ge.s32.totalorder %v14, 0
  %vm16 = vcmp.lt.s32.totalorder %v14, 512
  %vm17 = vmand %vm15, %vm16
  %18 = vst.msk [vmem:[%s2] sm:$0xf] %vm17, %v13
  // Predicated region
  $region10: #{residual_add.1} parent=0 // pred_check
    _
  $region11: #{residual_add.1} parent=0 // pred_check_branch
    %20 = sbr.rel (0) target = $region13
  $region12: #{residual_add.1} parent=0 // pred_region
    _
  $region13: #{residual_add.1} parent=0 // pred_fallthru
    _
  // Predicated region
  $region14: #{residual_add.1} parent=0 // pred_check
    _
  $region15: #{residual_add.1} parent=0 // pred_check_branch
    %22 = sbr.rel (0) target = $region17
  $region16: #{residual_add.1} parent=0 // pred_region
    _
  $region17: #{residual_add.1} parent=0 // pred_fallthru
    _

</llo_original>
